<compile_context>
chip_gen: v7x
topology: tpu7x:2x2x1
jax: 0.10.0
libtpu: 0.0.40
codegen_flags: <defaults>
</compile_context>

<pallas_src>
import functools

import jax
import jax.numpy as jnp
from jax import lax
from jax.experimental import pallas as pl
from jax.experimental.pallas import tpu as pltpu

EPS = 1e-5


def cnn_kernel(x_ref, w_ref, g_ref, gamma_ref, beta_ref, o_ref, *, inv_count):
    # x_ref:     (N, Hp, Wp*Cin)        spatially padded input, NHWC with (W, C) lane-merged
    # w_ref:     (KH, Wp*Cin, Wo*Cout)  block-Toeplitz packed conv weights
    # g_ref:     (Wo*Cout, Wo*Cout)     channel group-sum matrix  kron(1_{Wo x Wo}, I_Cout)
    # gamma_ref: (1, Wo*Cout)           BN gamma, tiled along the Wo lane groups
    # beta_ref:  (1, Wo*Cout)           BN beta,  tiled along the Wo lane groups
    # o_ref:     (N*Ho, Wo*Cout)        conv+BN+ReLU output (flattened NHWC, lane-dense)
    N, Hp, wpcin = x_ref.shape
    KH = w_ref.shape[0]
    Ho = Hp - KH + 1                       # stride = 1, dilation = 1
    NHo = N * Ho
    wocout = o_ref.shape[-1]

    # ---- Convolution: KH lane-dense MXU matmuls ---------------------------------
    # acc[n*Ho+h, w*Cout+co] =
    #   sum_{kh, wp, ci} x[n, h+kh, wp*Cin+ci] * w_ref[kh, wp*Cin+ci, w*Cout+co]
    acc = jnp.zeros((NHo, wocout), jnp.float32)
    for kh in range(KH):                                      # static -> fully unrolled
        x_kh = x_ref[:, kh:kh + Ho, :].reshape(NHo, wpcin)    # sublane slice, minor dim intact
        acc = acc + jnp.dot(x_kh, w_ref[kh],
                            preferred_element_type=jnp.float32)

    # ---- BatchNorm2d (train-mode batch stats), single fused pass ----------------
    # Sublane-reduce sum and sum-of-squares, then one tiny matmul against the
    # group-sum matrix collapses the per-w lane groups onto their channel and
    # broadcasts the per-channel totals straight back to every lane.
    s1 = jnp.sum(acc, axis=0, keepdims=True)                  # (1, Wo*Cout)
    s2 = jnp.sum(acc * acc, axis=0, keepdims=True)            # (1, Wo*Cout)
    tot1 = jnp.dot(s1, g_ref[...], preferred_element_type=jnp.float32)
    tot2 = jnp.dot(s2, g_ref[...], preferred_element_type=jnp.float32)
    mean = tot1 * inv_count
    var = tot2 * inv_count - mean * mean                      # biased variance (PyTorch train mode)

    # Fold gamma/beta into a single per-lane scale/shift, then fused affine + ReLU.
    scale = gamma_ref[...] * lax.rsqrt(var + EPS)             # (1, Wo*Cout)
    shift = beta_ref[...] - mean * scale                      # (1, Wo*Cout)
    o_ref[...] = jnp.maximum(acc * scale + shift, 0.0).astype(o_ref.dtype)


def cnn_forward(x_nchw, w_oihw, gamma, beta, *,
                padding=1, stride=1, dilation=1, groups=1):
    """x_nchw: (N, Cin, H, W); w_oihw: (Cout, Cin, KH, KW); gamma/beta: (Cout,)."""
    assert stride == 1 and dilation == 1 and groups == 1, (
        "Pallas CNN kernel implements the stride=1, dilation=1, groups=1 config; "
        "other hyperparameters are not supported.")
    N, Cin, H, W = x_nchw.shape
    Cout, Cin_w, KH, KW = w_oihw.shape
    assert Cin_w == Cin

    f32 = jnp.float32
    Hp, Wp = H + 2 * padding, W + 2 * padding
    Ho, Wo = Hp - KH + 1, Wp - KW + 1

    # --- layout plumbing (tiny, done once per call by XLA) -----------------------
    # Input: NCHW -> NHWC, zero-pad spatially, merge (W, C) into the lane axis.
    x_nhwc = jnp.transpose(x_nchw, (0, 2, 3, 1)).astype(f32)
    x_pad = jnp.pad(x_nhwc, ((0, 0), (padding, padding), (padding, padding), (0, 0)))
    x_in = x_pad.reshape(N, Hp, Wp * Cin)

    # Weights: pack each kernel row kh into a block-Toeplitz matrix so the kw shift
    # and the Cin contraction become a single lane-dense matmul:
    #   w_big[kh, wp*Cin+ci, w*Cout+co] = W[co, ci, kh, wp-w]   (0 <= wp-w < KW, else 0)
    w_k = jnp.transpose(w_oihw, (2, 3, 1, 0)).astype(f32)        # (KH, KW, Cin, Cout)
    kw_rel = jnp.arange(Wp)[:, None] - jnp.arange(Wo)[None, :]   # (Wp, Wo)
    valid = ((kw_rel >= 0) & (kw_rel < KW)).astype(f32)
    big = w_k[:, jnp.clip(kw_rel, 0, KW - 1)]                    # (KH, Wp, Wo, Cin, Cout)
    big = big * valid[None, :, :, None, None]
    w_big = jnp.transpose(big, (0, 1, 3, 2, 4)).reshape(KH, Wp * Cin, Wo * Cout)

    # BN helpers: per-channel group-sum matrix, gamma/beta pre-tiled to lane width.
    g_mat = jnp.tile(jnp.eye(Cout, dtype=f32), (Wo, Wo))         # (Wo*Cout, Wo*Cout)
    gamma_row = jnp.tile(gamma.astype(f32), Wo).reshape(1, Wo * Cout)
    beta_row = jnp.tile(beta.astype(f32), Wo).reshape(1, Wo * Cout)

    kernel = functools.partial(cnn_kernel, inv_count=1.0 / float(N * Ho * Wo))
    vmem = pltpu.MemorySpace.VMEM
    out2d = pl.pallas_call(
        kernel,
        out_shape=jax.ShapeDtypeStruct((N * Ho, Wo * Cout), f32),
        in_specs=[pl.BlockSpec(memory_space=vmem)] * 5,
        out_specs=pl.BlockSpec(memory_space=vmem),
    )(x_in, w_big, g_mat, gamma_row, beta_row)

    # (N*Ho, Wo*Cout) row-major == flattened NHWC. Free metadata reshape + one tiny
    # (16 KiB) transpose back to the PyTorch NCHW output convention.
    return jnp.transpose(out2d.reshape(N, Ho, Wo, Cout), (0, 3, 1, 2))


def cnn_reference(x_nchw, w_oihw, gamma, beta, *, padding=1):
    """Plain-JAX reference for correctness checking."""
    y = lax.conv_general_dilated(
        x_nchw.astype(jnp.float32),
        w_oihw.astype(jnp.float32),
        window_strides=(1, 1),
        padding=((padding, padding), (padding, padding)),
        dimension_numbers=("NCHW", "OIHW", "NCHW"),
    )
    mean = jnp.mean(y, axis=(0, 2, 3), keepdims=True)
    var = jnp.mean((y - mean) ** 2, axis=(0, 2, 3), keepdims=True)
    yhat = (y - mean) * lax.rsqrt(var + EPS)
    y = yhat * gamma.reshape(1, -1, 1, 1) + beta.reshape(1, -1, 1, 1)
    return jnp.maximum(y, 0.0)


if __name__ == "__main__":
    # Small, module-consistent shapes.
    N, Cin, H, W = 2, 4, 16, 16
    Cout, KH, KW = 8, 3, 3
    padding = 1

    key = jax.random.PRNGKey(0)
    kx, kw = jax.random.split(key)
    x = jax.random.normal(kx, (N, Cin, H, W), dtype=jnp.float32)
    # Deterministic conv weight init (kaiming-ish scale); bias=False.
    fan_in = Cin * KH * KW
    wconv = jax.random.normal(kw, (Cout, Cin, KH, KW), dtype=jnp.float32) * (
        2.0 / fan_in
    ) ** 0.5
    # BatchNorm affine params at PyTorch defaults.
    gamma = jnp.ones((Cout,), jnp.float32)
    beta = jnp.zeros((Cout,), jnp.float32)

    out = cnn_forward(x, wconv, gamma, beta, padding=padding)
    out = jax.block_until_ready(out)

    ref = cnn_reference(x, wconv, gamma, beta, padding=padding)
    assert out.shape == (N, Cout, H, W)
    assert jnp.allclose(out, ref, atol=1e-4, rtol=1e-4), float(
        jnp.max(jnp.abs(out - ref))
    )

    print("KERNEL_OK")
</pallas_src>

<mosaic_0001>
module attributes {stable_mosaic.version = 11 : i64} {
  func.func @cnn_kernel(%arg0: memref<2x18x72xf32, #tpu.memory_space<vmem>>, %arg1: memref<3x72x128xf32, #tpu.memory_space<vmem>>, %arg2: memref<128x128xf32, #tpu.memory_space<vmem>>, %arg3: memref<1x128xf32, #tpu.memory_space<vmem>>, %arg4: memref<1x128xf32, #tpu.memory_space<vmem>>, %arg5: memref<32x128xf32, #tpu.memory_space<vmem>>) attributes {dimension_semantics = [], scalar_prefetch = 0 : i64, scratch_operands = 0 : i64, tpu.core_type = #tpu.core_type<tc>} {
    %cst = arith.constant 0.000000e+00 : f32
    %0 = vector.broadcast %cst : f32 to vector<32x128xf32>
    %c0 = arith.constant 0 : index
    %c0_0 = arith.constant 0 : index
    %c0_1 = arith.constant 0 : index
    %1 = vector.load %arg0[%c0, %c0_0, %c0_1] : memref<2x18x72xf32, #tpu.memory_space<vmem>>, vector<2x16x72xf32>
    %2 = vector.shape_cast %1 : vector<2x16x72xf32> to vector<32x72xf32>
    %c0_2 = arith.constant 0 : index
    %c0_3 = arith.constant 0 : index
    %c0_4 = arith.constant 0 : index
    %3 = vector.load %arg1[%c0_2, %c0_3, %c0_4] : memref<3x72x128xf32, #tpu.memory_space<vmem>>, vector<1x72x128xf32>
    %4 = vector.shape_cast %3 : vector<1x72x128xf32> to vector<72x128xf32>
    %cst_5 = arith.constant dense<0.000000e+00> : vector<32x128xf32>
    %5 = tpu.matmul %2, %4, %cst_5 {dimension_numbers = #tpu.dot_dimension_numbers<[1], [0], [0], [1], [0, 0, 1, 1], [], []>} : vector<32x72xf32>, vector<72x128xf32>, vector<32x128xf32> -> vector<32x128xf32>
    %6 = arith.addf %0, %5 : vector<32x128xf32>
    %c0_6 = arith.constant 0 : index
    %c1 = arith.constant 1 : index
    %c0_7 = arith.constant 0 : index
    %7 = vector.load %arg0[%c0_6, %c1, %c0_7] : memref<2x18x72xf32, #tpu.memory_space<vmem>>, vector<2x16x72xf32>
    %8 = vector.shape_cast %7 : vector<2x16x72xf32> to vector<32x72xf32>
    %c1_8 = arith.constant 1 : index
    %c0_9 = arith.constant 0 : index
    %c0_10 = arith.constant 0 : index
    %9 = vector.load %arg1[%c1_8, %c0_9, %c0_10] : memref<3x72x128xf32, #tpu.memory_space<vmem>>, vector<1x72x128xf32>
    %10 = vector.shape_cast %9 : vector<1x72x128xf32> to vector<72x128xf32>
    %cst_11 = arith.constant dense<0.000000e+00> : vector<32x128xf32>
    %11 = tpu.matmul %8, %10, %cst_11 {dimension_numbers = #tpu.dot_dimension_numbers<[1], [0], [0], [1], [0, 0, 1, 1], [], []>} : vector<32x72xf32>, vector<72x128xf32>, vector<32x128xf32> -> vector<32x128xf32>
    %12 = arith.addf %6, %11 : vector<32x128xf32>
    %c0_12 = arith.constant 0 : index
    %c2 = arith.constant 2 : index
    %c0_13 = arith.constant 0 : index
    %13 = vector.load %arg0[%c0_12, %c2, %c0_13] : memref<2x18x72xf32, #tpu.memory_space<vmem>>, vector<2x16x72xf32>
    %14 = vector.shape_cast %13 : vector<2x16x72xf32> to vector<32x72xf32>
    %c2_14 = arith.constant 2 : index
    %c0_15 = arith.constant 0 : index
    %c0_16 = arith.constant 0 : index
    %15 = vector.load %arg1[%c2_14, %c0_15, %c0_16] : memref<3x72x128xf32, #tpu.memory_space<vmem>>, vector<1x72x128xf32>
    %16 = vector.shape_cast %15 : vector<1x72x128xf32> to vector<72x128xf32>
    %cst_17 = arith.constant dense<0.000000e+00> : vector<32x128xf32>
    %17 = tpu.matmul %14, %16, %cst_17 {dimension_numbers = #tpu.dot_dimension_numbers<[1], [0], [0], [1], [0, 0, 1, 1], [], []>} : vector<32x72xf32>, vector<72x128xf32>, vector<32x128xf32> -> vector<32x128xf32>
    %18 = arith.addf %12, %17 : vector<32x128xf32>
    %cst_18 = arith.constant dense<0.000000e+00> : vector<128xf32>
    %19 = vector.multi_reduction <add>, %18, %cst_18 [0] : vector<32x128xf32> to vector<128xf32>
    %20 = vector.shape_cast %19 : vector<128xf32> to vector<1x128xf32>
    %21 = arith.mulf %18, %18 : vector<32x128xf32>
    %cst_19 = arith.constant dense<0.000000e+00> : vector<128xf32>
    %22 = vector.multi_reduction <add>, %21, %cst_19 [0] : vector<32x128xf32> to vector<128xf32>
    %23 = vector.shape_cast %22 : vector<128xf32> to vector<1x128xf32>
    %c0_20 = arith.constant 0 : index
    %c0_21 = arith.constant 0 : index
    %24 = vector.load %arg2[%c0_20, %c0_21] : memref<128x128xf32, #tpu.memory_space<vmem>>, vector<128x128xf32>
    %cst_22 = arith.constant dense<0.000000e+00> : vector<1x128xf32>
    %25 = tpu.matmul %20, %24, %cst_22 {dimension_numbers = #tpu.dot_dimension_numbers<[1], [0], [0], [1], [0, 0, 1, 1], [], []>} : vector<1x128xf32>, vector<128x128xf32>, vector<1x128xf32> -> vector<1x128xf32>
    %c0_23 = arith.constant 0 : index
    %c0_24 = arith.constant 0 : index
    %26 = vector.load %arg2[%c0_23, %c0_24] : memref<128x128xf32, #tpu.memory_space<vmem>>, vector<128x128xf32>
    %cst_25 = arith.constant dense<0.000000e+00> : vector<1x128xf32>
    %27 = tpu.matmul %23, %26, %cst_25 {dimension_numbers = #tpu.dot_dimension_numbers<[1], [0], [0], [1], [0, 0, 1, 1], [], []>} : vector<1x128xf32>, vector<128x128xf32>, vector<1x128xf32> -> vector<1x128xf32>
    %cst_26 = arith.constant 0.001953125 : f32
    %28 = vector.broadcast %cst_26 : f32 to vector<1x128xf32>
    %29 = arith.mulf %25, %28 : vector<1x128xf32>
    %cst_27 = arith.constant 0.001953125 : f32
    %30 = vector.broadcast %cst_27 : f32 to vector<1x128xf32>
    %31 = arith.mulf %27, %30 : vector<1x128xf32>
    %32 = arith.mulf %29, %29 : vector<1x128xf32>
    %33 = arith.subf %31, %32 : vector<1x128xf32>
    %c0_28 = arith.constant 0 : index
    %c0_29 = arith.constant 0 : index
    %34 = vector.load %arg3[%c0_28, %c0_29] : memref<1x128xf32, #tpu.memory_space<vmem>>, vector<1x128xf32>
    %cst_30 = arith.constant 9.99999974E-6 : f32
    %35 = vector.broadcast %cst_30 : f32 to vector<1x128xf32>
    %36 = arith.addf %33, %35 : vector<1x128xf32>
    %37 = math.rsqrt %36 : vector<1x128xf32>
    %38 = arith.mulf %34, %37 : vector<1x128xf32>
    %c0_31 = arith.constant 0 : index
    %c0_32 = arith.constant 0 : index
    %39 = vector.load %arg4[%c0_31, %c0_32] : memref<1x128xf32, #tpu.memory_space<vmem>>, vector<1x128xf32>
    %40 = arith.mulf %29, %38 : vector<1x128xf32>
    %41 = arith.subf %39, %40 : vector<1x128xf32>
    %42 = vector.broadcast %38 : vector<1x128xf32> to vector<32x128xf32>
    %43 = arith.mulf %18, %42 : vector<32x128xf32>
    %44 = vector.broadcast %41 : vector<1x128xf32> to vector<32x128xf32>
    %45 = arith.addf %43, %44 : vector<32x128xf32>
    %cst_33 = arith.constant 0.000000e+00 : f32
    %46 = vector.broadcast %cst_33 : f32 to vector<32x128xf32>
    %47 = arith.maximumf %45, %46 : vector<32x128xf32>
    %c0_34 = arith.constant 0 : index
    %c0_35 = arith.constant 0 : index
    %48 = vector.load %arg5[%c0_34, %c0_35] : memref<32x128xf32, #tpu.memory_space<vmem>>, vector<32x128xf32>
    tpu.vector_store %arg5[%c0_34, %c0_35], %47 {strides = array<i32>} : memref<32x128xf32, #tpu.memory_space<vmem>>, vector<32x128xf32>,
    return
  }
}

</mosaic_0001>

<llo_original>
// kernel: tpu_custom_call.1
$region0: #{tpu_custom_call.1}
  #allocation0 [shape = 'u32[]', space=smem, size = 0x4, offset = 0x4, fixed_abs, tag = 'smem constant byte address 0x4 - core index']
  #allocation1 [shape = 'u32[144,128]{1,0:T(1,128)}', space=vmem, size = 0x12000, scoped, tag = 'internal scratch']
  %s0 = inlined_call_operand.vmem [shape: f32[2,18,72], index: 0, kind: input, shape index: {}]
  %s1 = inlined_call_operand.hbm [shape: f32[3,72,128], index: 1, kind: input, shape index: {}]
  %s2 = inlined_call_operand.hbm [shape: f32[128,128], index: 2, kind: input, shape index: {}]
  %s3 = inlined_call_operand.vmem [shape: f32[1,128], index: 3, kind: input, shape index: {}]
  %s4 = inlined_call_operand.vmem [shape: f32[1,128], index: 4, kind: input, shape index: {}]
  %s5 = inlined_call_operand.hbm [shape: f32[32,128], index: 5, kind: output, shape index: {}]
  %s6 = sld [smem:[#allocation0]]
  $region38: #{tpu_custom_call.1} parent=0
    _
  %s8 = ssub.s32 1, %s6
  %s9 = scalar_select 0, %s8, %s6
  $region1: #{tpu_custom_call.1} parent=0
    #allocation2 [shape = 'u8[110592]{0}', space=vmem, size = 0x1b000, scoped, tag = 'input window, operand 1, single buffered']
    #allocation3 [shape = 's32[1]{0}', space=sflag, size = 0x4, scoped, tag = 'scoped memory for tpu_custom_call.1']
    #allocation4 [shape = 's32[1]{0}', space=sflag, size = 0x4, scoped, tag = 'scoped memory for tpu_custom_call.1']
    #allocation5 [shape = 'u8[65536]{0}', space=vmem, size = 0x10000, scoped, tag = 'input window, operand 2, single buffered']
    #allocation6 [shape = 's32[1]{0}', space=sflag, size = 0x4, scoped, tag = 'scoped memory for tpu_custom_call.1']
    #allocation7 [shape = 'u8[16384]{0}', space=vmem, size = 0x4000, scoped, tag = 'output window, operand 0, single buffered']
    %10 = vsyncpa [#allocation3], 0
    %11 = vsyncpa [#allocation6], 0
    %12 = vsyncpa [#allocation4], 0
    // Predicated region
    $region2: #{tpu_custom_call.1} parent=1 // pred_check
      _
    $region3: #{tpu_custom_call.1} parent=1 // pred_check_branch
      %14 = sbr.rel (0) target = $region5
    $region4: #{tpu_custom_call.1} parent=1 // pred_region
      _
    $region5: #{tpu_custom_call.1} parent=1 // pred_fallthru
      _
    // Predicated region
    $region6: #{tpu_custom_call.1} parent=1 // pred_check
      _
    $region7: #{tpu_custom_call.1} parent=1 // pred_check_branch
      %16 = sbr.rel (0) target = $region9
    $region8: #{tpu_custom_call.1} parent=1 // pred_region
      %s18 = ssub.s32 3456, 3456
      %19 = vsyncadd [#allocation3], %s18
      %s20 = sshll.u32 [#allocation2], 4
      %s21 = int_to_ptr.vmem [resolvable:$true] %s20
      %26 = dma.hbm_to_vmem [thread:$0]  %s1, 3456, %s21, [#allocation3], 128, 128, 8
    $region9: #{tpu_custom_call.1} parent=1 // pred_fallthru
      _
    // Predicated region
    $region10: #{tpu_custom_call.1} parent=1 // pred_check
      _
    $region11: #{tpu_custom_call.1} parent=1 // pred_check_branch
      %28 = sbr.rel (0) target = $region13
    $region12: #{tpu_custom_call.1} parent=1 // pred_region
      %s30 = ssub.s32 2048, 2048
      %31 = vsyncadd [#allocation6], %s30
      %s32 = sshll.u32 [#allocation5], 4
      %s33 = int_to_ptr.vmem [resolvable:$true] %s32
      %38 = dma.hbm_to_vmem [thread:$0]  %s2, 2048, %s33, [#allocation6], 128, 128, 8
    $region13: #{tpu_custom_call.1} parent=1 // pred_fallthru
      _
    // Predicated region
    $region14: #{tpu_custom_call.1} parent=1 // pred_check
      _
    $region15: #{tpu_custom_call.1} parent=1 // pred_check_branch
      %40 = sbr.rel (0) target = $region17
    $region16: #{tpu_custom_call.1} parent=1 // pred_region
      _
    $region17: #{tpu_custom_call.1} parent=1 // pred_fallthru
      _
    // Predicated region
    $region18: #{tpu_custom_call.1} parent=1 // pred_check
      _
    $region19: #{tpu_custom_call.1} parent=1 // pred_check_branch
      %42 = sbr.rel (0) target = $region21
    $region20: #{tpu_custom_call.1} parent=1 // pred_region
      _
    $region21: #{tpu_custom_call.1} parent=1 // pred_fallthru
      _
    // Predicated region
    $region22: #{tpu_custom_call.1} parent=1 // pred_check
      _
    $region23: #{tpu_custom_call.1} parent=1 // pred_check_branch
      %44 = sbr.rel (0) target = $region25
    $region24: #{tpu_custom_call.1} parent=1 // pred_region
      %45 = dma.done [#allocation3], 3456
    $region25: #{tpu_custom_call.1} parent=1 // pred_fallthru
      _
    // Predicated region
    $region26: #{tpu_custom_call.1} parent=1 // pred_check
      _
    $region27: #{tpu_custom_call.1} parent=1 // pred_check_branch
      %47 = sbr.rel (0) target = $region29
    $region28: #{tpu_custom_call.1} parent=1 // pred_region
      %48 = dma.done [#allocation6], 2048
    $region29: #{tpu_custom_call.1} parent=1 // pred_fallthru
      _
    %v49 = vld [vmem:[%s0] sm:$0xff]
    %v50 = vld [vmem:[%s0 + $0x8] sm:$0xff]
    %v51 = vld [vmem:[%s0 + $0x18] sm:$0xff]
    %v52 = vld [vmem:[%s0 + $0x20] sm:$0xff]
    %v53 = vld [vmem:[#allocation2] sm:$0xff]
    %v54 = vld [vmem:[#allocation2 + $0x8] sm:$0xff]
    %v55 = vld [vmem:[#allocation2 + $0x10] sm:$0xff]
    %v56 = vld [vmem:[#allocation2 + $0x18] sm:$0xff]
    %v57 = vld [vmem:[#allocation2 + $0x20] sm:$0xff]
    %v58 = vld [vmem:[#allocation2 + $0x28] sm:$0xff]
    %v59 = vld [vmem:[#allocation2 + $0x30] sm:$0xff]
    %v60 = vld [vmem:[#allocation2 + $0x38] sm:$0xff]
    %v61 = vld [vmem:[#allocation2 + $0x40] sm:$0xff]
    %v62 = vld [vmem:[%s0 + $0x1] sm:$0xff]
    %v63 = vld [vmem:[%s0 + $0x9] sm:$0xff]
    %v64 = vld [vmem:[%s0 + $0x19] sm:$0xff]
    %v65 = vld [vmem:[%s0 + $0x21] sm:$0xff]
    %s66 = scalar_lea.vmem [#allocation2], 72
    %v67 = vld [vmem:[%s66] sm:$0xff]
    %v68 = vld [vmem:[%s66 + $0x8] sm:$0xff]
    %v69 = vld [vmem:[%s66 + $0x10] sm:$0xff]
    %v70 = vld [vmem:[%s66 + $0x18] sm:$0xff]
    %v71 = vld [vmem:[%s66 + $0x20] sm:$0xff]
    %v72 = vld [vmem:[%s66 + $0x28] sm:$0xff]
    %v73 = vld [vmem:[%s66 + $0x30] sm:$0xff]
    %v74 = vld [vmem:[%s66 + $0x38] sm:$0xff]
    %v75 = vld [vmem:[%s66 + $0x40] sm:$0xff]
    %vm76 = vcmask 588800
    %v78 = vsel %vm76, %v62, 0
    %v81 = vsel %vm76, %v63, 0
    %v84 = vsel %vm76, %v64, 0
    %v87 = vsel %vm76, %v65, 0
    %89 = vmatprep.subr.mxu0 0.0
    %90 = vmatpush1.msra.mxu0 %v67
    %91 = vmatprep.subr.mxu0 0.0
    %92 = vmatpush1.msra.mxu0 %v68
    %93 = vmatprep.subr.mxu0 0.0
    %94 = vmatpush1.msra.mxu0 %v69
    %95 = vmatprep.subr.mxu0 0.0
    %96 = vmatpush1.msra.mxu0 %v70
    %97 = vmatprep.subr.mxu0 0.0
    %98 = vmatpush1.msra.mxu0 %v71
    %99 = vmatprep.subr.mxu0 0.0
    %100 = vmatpush1.msra.mxu0 %v72
    %101 = vmatprep.subr.mxu0 0.0
    %102 = vmatpush1.msra.mxu0 %v73
    %103 = vmatprep.subr.mxu0 0.0
    %104 = vmatpush1.msra.mxu0 %v74
    %105 = vmatprep.subr.mxu0 0.0
    %106 = vmatpush1.msra.mxu0 %v75
    %107 = vmatprep.subr.mxu0 0.0
    %108 = vmatpush1.msra.mxu0 0.0
    %109 = vmatprep.subr.mxu0 0.0
    %110 = vmatpush1.msra.mxu0 0.0
    %111 = vmatprep.subr.mxu0 0.0
    %112 = vmatpush1.msra.mxu0 0.0
    %113 = vmatprep.subr.mxu0 0.0
    %114 = vmatpush1.msra.mxu0 0.0
    %115 = vmatprep.subr.mxu0 0.0
    %116 = vmatpush1.msra.mxu0 0.0
    %117 = vmatprep.subr.mxu0 0.0
    %118 = vmatpush1.msra.mxu0 0.0
    %119 = vmatprep.subr.mxu0 0.0
    %120 = vmatpush1.msra.mxu0 0.0
    %121 = vmatprep.subr.mxu0 0.0
    %122 = vmatpush1.msra.mxu0 0.0
    %123 = vmatprep.subr.mxu0 0.0
    %124 = vmatpush1.msra.mxu0 0.0
    %125 = vmatprep.subr.mxu0 0.0
    %126 = vmatpush1.msra.mxu0 0.0
    %127 = vmatprep.subr.mxu0 0.0
    %128 = vmatpush1.msra.mxu0 0.0
    %129 = vmatprep.subr.mxu0 0.0
    %130 = vmatpush1.msra.mxu0 0.0
    %131 = vmatprep.subr.mxu0 0.0
    %132 = vmatpush1.msra.mxu0 0.0
    %133 = vmatprep.subr.mxu0 0.0
    %134 = vmatpush1.msra.mxu0 0.0
    %135 = vmatprep.subr.mxu0 0.0
    %136 = vmatpush1.msra.mxu0 0.0
    %137 = vmatprep.subr.mxu0 0.0
    %138 = vmatpush1.msra.mxu0 0.0
    %139 = vmatprep.subr.mxu0 0.0
    %140 = vmatpush1.msra.mxu0 0.0
    %141 = vmatprep.subr.mxu0 0.0
    %142 = vmatpush1.msra.mxu0 0.0
    %143 = vmatprep.subr.mxu0 0.0
    %144 = vmatpush1.msra.mxu0 0.0
    %145 = vmatprep.subr.mxu0 0.0
    %146 = vmatpush1.msra.mxu0 0.0
    %147 = vmatprep.subr.mxu0 0.0
    %148 = vmatpush1.msra.mxu0 0.0
    %149 = vmatprep.subr.mxu0 0.0
    %150 = vmatpush1.msra.mxu0 0.0
    %151 = vmatprep.subr.mxu0 0.0
    %152 = vmatpush1.msra.mxu0 0.0
    %153 = vmatprep.mubr.f32.mxu0 0.0
    %154 = vmatmul.mubr.f32.gmra.mrb[0].mxu0 %v78
    %v155 = vpop.f32.mrb[0].mxu0
    %v156 = vadd.f32 0.0, %v155
    %v157 = vpop.f32.mrb[0].mxu0
    %158 = vmatprep.mubr.f32.mxu0 0.0
    %159 = vmatmul.mubr.f32.gmra.mrb[0].mxu0 %v81
    %v160 = vpop.f32.mrb[0].mxu0
    %v161 = vadd.f32 0.0, %v160
    %v162 = vpop.f32.mrb[0].mxu0
    %163 = vmatprep.mubr.f32.mxu0 0.0
    %164 = vmatmul.mubr.f32.gmra.mrb[0].mxu0 %v84
    %v165 = vpop.f32.mrb[0].mxu0
    %v166 = vadd.f32 0.0, %v165
    %v167 = vpop.f32.mrb[0].mxu0
    %168 = vmatprep.mubr.f32.mxu0 0.0
    %169 = vmatmul.mubr.f32.gmra.mrb[0].mxu0 %v87
    %v170 = vpop.f32.mrb[0].mxu0
    %v171 = vadd.f32 0.0, %v170
    %v172 = vpop.f32.mrb[0].mxu0
    %173 = vdwg.mxu0
    %v175 = vsel %vm76, %v49, 0
    %v178 = vsel %vm76, %v50, 0
    %v181 = vsel %vm76, %v51, 0
    %v184 = vsel %vm76, %v52, 0
    %186 = vmatprep.subr.mxu0 0.0
    %187 = vmatpush1.msra.mxu0 %v53
    %188 = vmatprep.subr.mxu0 0.0
    %189 = vmatpush1.msra.mxu0 %v54
    %190 = vmatprep.subr.mxu0 0.0
    %191 = vmatpush1.msra.mxu0 %v55
    %192 = vmatprep.subr.mxu0 0.0
    %193 = vmatpush1.msra.mxu0 %v56
    %194 = vmatprep.subr.mxu0 0.0
    %195 = vmatpush1.msra.mxu0 %v57
    %196 = vmatprep.subr.mxu0 0.0
    %197 = vmatpush1.msra.mxu0 %v58
    %198 = vmatprep.subr.mxu0 0.0
    %199 = vmatpush1.msra.mxu0 %v59
    %200 = vmatprep.subr.mxu0 0.0
    %201 = vmatpush1.msra.mxu0 %v60
    %202 = vmatprep.subr.mxu0 0.0
    %203 = vmatpush1.msra.mxu0 %v61
    %204 = vmatprep.subr.mxu0 0.0
    %205 = vmatpush1.msra.mxu0 0.0
    %206 = vmatprep.subr.mxu0 0.0
    %207 = vmatpush1.msra.mxu0 0.0
    %208 = vmatprep.subr.mxu0 0.0
    %209 = vmatpush1.msra.mxu0 0.0
    %210 = vmatprep.subr.mxu0 0.0
    %211 = vmatpush1.msra.mxu0 0.0
    %212 = vmatprep.subr.mxu0 0.0
    %213 = vmatpush1.msra.mxu0 0.0
    %214 = vmatprep.subr.mxu0 0.0
    %215 = vmatpush1.msra.mxu0 0.0
    %216 = vmatprep.subr.mxu0 0.0
    %217 = vmatpush1.msra.mxu0 0.0
    %218 = vmatprep.subr.mxu0 0.0
    %219 = vmatpush1.msra.mxu0 0.0
    %220 = vmatprep.subr.mxu0 0.0
    %221 = vmatpush1.msra.mxu0 0.0
    %222 = vmatprep.subr.mxu0 0.0
    %223 = vmatpush1.msra.mxu0 0.0
    %224 = vmatprep.subr.mxu0 0.0
    %225 = vmatpush1.msra.mxu0 0.0
    %226 = vmatprep.subr.mxu0 0.0
    %227 = vmatpush1.msra.mxu0 0.0
    %228 = vmatprep.subr.mxu0 0.0
    %229 = vmatpush1.msra.mxu0 0.0
    %230 = vmatprep.subr.mxu0 0.0
    %231 = vmatpush1.msra.mxu0 0.0
    %232 = vmatprep.subr.mxu0 0.0
    %233 = vmatpush1.msra.mxu0 0.0
    %234 = vmatprep.subr.mxu0 0.0
    %235 = vmatpush1.msra.mxu0 0.0
    %236 = vmatprep.subr.mxu0 0.0
    %237 = vmatpush1.msra.mxu0 0.0
    %238 = vmatprep.subr.mxu0 0.0
    %239 = vmatpush1.msra.mxu0 0.0
    %240 = vmatprep.subr.mxu0 0.0
    %241 = vmatpush1.msra.mxu0 0.0
    %242 = vmatprep.subr.mxu0 0.0
    %243 = vmatpush1.msra.mxu0 0.0
    %244 = vmatprep.subr.mxu0 0.0
    %245 = vmatpush1.msra.mxu0 0.0
    %246 = vmatprep.subr.mxu0 0.0
    %247 = vmatpush1.msra.mxu0 0.0
    %248 = vmatprep.subr.mxu0 0.0
    %249 = vmatpush1.msra.mxu0 0.0
    %250 = vmatprep.mubr.f32.mxu0 0.0
    %251 = vmatmul.mubr.f32.gmra.mrb[0].mxu0 %v175
    %v252 = vpop.f32.mrb[0].mxu0
    %v253 = vadd.f32 %v156, %v252
    %v254 = vpop.f32.mrb[0].mxu0
    %255 = vmatprep.mubr.f32.mxu0 0.0
    %256 = vmatmul.mubr.f32.gmra.mrb[0].mxu0 %v178
    %v257 = vpop.f32.mrb[0].mxu0
    %v258 = vadd.f32 %v161, %v257
    %v259 = vpop.f32.mrb[0].mxu0
    %260 = vmatprep.mubr.f32.mxu0 0.0
    %261 = vmatmul.mubr.f32.gmra.mrb[0].mxu0 %v181
    %v262 = vpop.f32.mrb[0].mxu0
    %v263 = vadd.f32 %v166, %v262
    %v264 = vpop.f32.mrb[0].mxu0
    %265 = vmatprep.mubr.f32.mxu0 0.0
    %266 = vmatmul.mubr.f32.gmra.mrb[0].mxu0 %v184
    %v267 = vpop.f32.mrb[0].mxu0
    %v268 = vadd.f32 %v171, %v267
    %v269 = vpop.f32.mrb[0].mxu0
    %270 = vdwg.mxu0
    %v271 = vld [vmem:[%s0 + $0x2] sm:$0xff]
    %v272 = vld [vmem:[%s0 + $0xa] sm:$0xff]
    %v273 = vld [vmem:[%s0 + $0x1a] sm:$0xff]
    %v274 = vld [vmem:[%s0 + $0x22] sm:$0xff]
    %s275 = scalar_lea.vmem [#allocation2], 144
    %v276 = vld [vmem:[%s275] sm:$0xff]
    %v277 = vld [vmem:[%s275 + $0x8] sm:$0xff]
    %v278 = vld [vmem:[%s275 + $0x10] sm:$0xff]
    %v279 = vld [vmem:[%s275 + $0x18] sm:$0xff]
    %v280 = vld [vmem:[%s275 + $0x20] sm:$0xff]
    %v281 = vld [vmem:[%s275 + $0x28] sm:$0xff]
    %v282 = vld [vmem:[%s275 + $0x30] sm:$0xff]
    %v283 = vld [vmem:[%s275 + $0x38] sm:$0xff]
    %v284 = vld [vmem:[%s275 + $0x40] sm:$0xff]
    %v286 = vsel %vm76, %v271, 0
    %v289 = vsel %vm76, %v272, 0
    %v292 = vsel %vm76, %v273, 0
    %v295 = vsel %vm76, %v274, 0
    %297 = vmatprep.subr.mxu0 0.0
    %298 = vmatpush1.msra.mxu0 %v276
    %299 = vmatprep.subr.mxu0 0.0
    %300 = vmatpush1.msra.mxu0 %v277
    %301 = vmatprep.subr.mxu0 0.0
    %302 = vmatpush1.msra.mxu0 %v278
    %303 = vmatprep.subr.mxu0 0.0
    %304 = vmatpush1.msra.mxu0 %v279
    %305 = vmatprep.subr.mxu0 0.0
    %306 = vmatpush1.msra.mxu0 %v280
    %307 = vmatprep.subr.mxu0 0.0
    %308 = vmatpush1.msra.mxu0 %v281
    %309 = vmatprep.subr.mxu0 0.0
    %310 = vmatpush1.msra.mxu0 %v282
    %311 = vmatprep.subr.mxu0 0.0
    %312 = vmatpush1.msra.mxu0 %v283
    %313 = vmatprep.subr.mxu0 0.0
    %314 = vmatpush1.msra.mxu0 %v284
    %315 = vmatprep.subr.mxu0 0.0
    %316 = vmatpush1.msra.mxu0 0.0
    %317 = vmatprep.subr.mxu0 0.0
    %318 = vmatpush1.msra.mxu0 0.0
    %319 = vmatprep.subr.mxu0 0.0
    %320 = vmatpush1.msra.mxu0 0.0
    %321 = vmatprep.subr.mxu0 0.0
    %322 = vmatpush1.msra.mxu0 0.0
    %323 = vmatprep.subr.mxu0 0.0
    %324 = vmatpush1.msra.mxu0 0.0
    %325 = vmatprep.subr.mxu0 0.0
    %326 = vmatpush1.msra.mxu0 0.0
    %327 = vmatprep.subr.mxu0 0.0
    %328 = vmatpush1.msra.mxu0 0.0
    %329 = vmatprep.subr.mxu0 0.0
    %330 = vmatpush1.msra.mxu0 0.0
    %331 = vmatprep.subr.mxu0 0.0
    %332 = vmatpush1.msra.mxu0 0.0
    %333 = vmatprep.subr.mxu0 0.0
    %334 = vmatpush1.msra.mxu0 0.0
    %335 = vmatprep.subr.mxu0 0.0
    %336 = vmatpush1.msra.mxu0 0.0
    %337 = vmatprep.subr.mxu0 0.0
    %338 = vmatpush1.msra.mxu0 0.0
    %339 = vmatprep.subr.mxu0 0.0
    %340 = vmatpush1.msra.mxu0 0.0
    %341 = vmatprep.subr.mxu0 0.0
    %342 = vmatpush1.msra.mxu0 0.0
    %343 = vmatprep.subr.mxu0 0.0
    %344 = vmatpush1.msra.mxu0 0.0
    %345 = vmatprep.subr.mxu0 0.0
    %346 = vmatpush1.msra.mxu0 0.0
    %347 = vmatprep.subr.mxu0 0.0
    %348 = vmatpush1.msra.mxu0 0.0
    %349 = vmatprep.subr.mxu0 0.0
    %350 = vmatpush1.msra.mxu0 0.0
    %351 = vmatprep.subr.mxu0 0.0
    %352 = vmatpush1.msra.mxu0 0.0
    %353 = vmatprep.subr.mxu0 0.0
    %354 = vmatpush1.msra.mxu0 0.0
    %355 = vmatprep.subr.mxu0 0.0
    %356 = vmatpush1.msra.mxu0 0.0
    %357 = vmatprep.subr.mxu0 0.0
    %358 = vmatpush1.msra.mxu0 0.0
    %359 = vmatprep.subr.mxu0 0.0
    %360 = vmatpush1.msra.mxu0 0.0
    %361 = vmatprep.mubr.f32.mxu0 0.0
    %362 = vmatmul.mubr.f32.gmra.mrb[0].mxu0 %v286
    %v363 = vpop.f32.mrb[0].mxu0
    %v364 = vadd.f32 0.0, %v363
    %v365 = vpop.f32.mrb[0].mxu0
    %366 = vmatprep.mubr.f32.mxu0 0.0
    %367 = vmatmul.mubr.f32.gmra.mrb[0].mxu0 %v289
    %v368 = vpop.f32.mrb[0].mxu0
    %v369 = vadd.f32 0.0, %v368
    %v370 = vpop.f32.mrb[0].mxu0
    %371 = vmatprep.mubr.f32.mxu0 0.0
    %372 = vmatmul.mubr.f32.gmra.mrb[0].mxu0 %v292
    %v373 = vpop.f32.mrb[0].mxu0
    %v374 = vadd.f32 0.0, %v373
    %v375 = vpop.f32.mrb[0].mxu0
    %376 = vmatprep.mubr.f32.mxu0 0.0
    %377 = vmatmul.mubr.f32.gmra.mrb[0].mxu0 %v295
    %v378 = vpop.f32.mrb[0].mxu0
    %v379 = vadd.f32 0.0, %v378
    %v380 = vpop.f32.mrb[0].mxu0
    %381 = vdwg.mxu0
    %v382 = vadd.f32 %v253, %v364
    %v383 = vadd.f32 %v258, %v369
    %v384 = vadd.f32 %v263, %v374
    %v385 = vadd.f32 %v268, %v379
    %v386 = vadd.f32 %v382, %v383
    %v387 = vadd.f32 %v386, %v384
    %v388 = vadd.f32 %v387, %v385
    %v389 = vrot.slane %v388, 4
    %v390 = vadd.f32 %v388, %v389
    %v391 = vrot.slane %v390, 2
    %v392 = vadd.f32 %v390, %v391
    %v393 = vrot.slane %v392, 1
    %v394 = vadd.f32 %v392, %v393
    %v395 = vmul.f32 %v382, %v382
    %v396 = vmul.f32 %v383, %v383
    %v397 = vmul.f32 %v384, %v384
    %v398 = vmul.f32 %v385, %v385
    %v399 = vadd.f32 %v395, %v396
    %v400 = vadd.f32 %v399, %v397
    %v401 = vadd.f32 %v400, %v398
    %v402 = vrot.slane %v401, 4
    %v403 = vadd.f32 %v401, %v402
    %v404 = vrot.slane %v403, 2
    %v405 = vadd.f32 %v403, %v404
    %v406 = vrot.slane %v405, 1
    %v407 = vadd.f32 %v405, %v406
    %v408 = vld [vmem:[#allocation5] sm:$0xff]
    %v409 = vld [vmem:[#allocation5 + $0x8] sm:$0xff]
    %v410 = vld [vmem:[#allocation5 + $0x10] sm:$0xff]
    %v411 = vld [vmem:[#allocation5 + $0x18] sm:$0xff]
    %v412 = vld [vmem:[#allocation5 + $0x20] sm:$0xff]
    %v413 = vld [vmem:[#allocation5 + $0x28] sm:$0xff]
    %v414 = vld [vmem:[#allocation5 + $0x30] sm:$0xff]
    %v415 = vld [vmem:[#allocation5 + $0x38] sm:$0xff]
    %v416 = vld [vmem:[#allocation5 + $0x40] sm:$0xff]
    %v417 = vld [vmem:[#allocation5 + $0x48] sm:$0xff]
    %v418 = vld [vmem:[#allocation5 + $0x50] sm:$0xff]
    %v419 = vld [vmem:[#allocation5 + $0x58] sm:$0xff]
    %v420 = vld [vmem:[#allocation5 + $0x60] sm:$0xff]
    %v421 = vld [vmem:[#allocation5 + $0x68] sm:$0xff]
    %v422 = vld [vmem:[#allocation5 + $0x70] sm:$0xff]
    %v423 = vld [vmem:[#allocation5 + $0x78] sm:$0xff]
    %424 = vmatprep.subr.mxu0 0.0
    %425 = vmatpush1.msra.mxu0 %v408
    %426 = vmatprep.subr.mxu0 0.0
    %427 = vmatpush1.msra.mxu0 %v409
    %428 = vmatprep.subr.mxu0 0.0
    %429 = vmatpush1.msra.mxu0 %v410
    %430 = vmatprep.subr.mxu0 0.0
    %431 = vmatpush1.msra.mxu0 %v411
    %432 = vmatprep.subr.mxu0 0.0
    %433 = vmatpush1.msra.mxu0 %v412
    %434 = vmatprep.subr.mxu0 0.0
    %435 = vmatpush1.msra.mxu0 %v413
    %436 = vmatprep.subr.mxu0 0.0
    %437 = vmatpush1.msra.mxu0 %v414
    %438 = vmatprep.subr.mxu0 0.0
    %439 = vmatpush1.msra.mxu0 %v415
    %440 = vmatprep.subr.mxu0 0.0
    %441 = vmatpush1.msra.mxu0 %v416
    %442 = vmatprep.subr.mxu0 0.0
    %443 = vmatpush1.msra.mxu0 %v417
    %444 = vmatprep.subr.mxu0 0.0
    %445 = vmatpush1.msra.mxu0 %v418
    %446 = vmatprep.subr.mxu0 0.0
    %447 = vmatpush1.msra.mxu0 %v419
    %448 = vmatprep.subr.mxu0 0.0
    %449 = vmatpush1.msra.mxu0 %v420
    %450 = vmatprep.subr.mxu0 0.0
    %451 = vmatpush1.msra.mxu0 %v421
    %452 = vmatprep.subr.mxu0 0.0
    %453 = vmatpush1.msra.mxu0 %v422
    %454 = vmatprep.subr.mxu0 0.0
    %455 = vmatpush1.msra.mxu0 %v423
    %456 = vmatprep.subr.mxu0 0.0
    %457 = vmatpush1.msra.mxu0 0.0
    %458 = vmatprep.subr.mxu0 0.0
    %459 = vmatpush1.msra.mxu0 0.0
    %460 = vmatprep.subr.mxu0 0.0
    %461 = vmatpush1.msra.mxu0 0.0
    %462 = vmatprep.subr.mxu0 0.0
    %463 = vmatpush1.msra.mxu0 0.0
    %464 = vmatprep.subr.mxu0 0.0
    %465 = vmatpush1.msra.mxu0 0.0
    %466 = vmatprep.subr.mxu0 0.0
    %467 = vmatpush1.msra.mxu0 0.0
    %468 = vmatprep.subr.mxu0 0.0
    %469 = vmatpush1.msra.mxu0 0.0
    %470 = vmatprep.subr.mxu0 0.0
    %471 = vmatpush1.msra.mxu0 0.0
    %472 = vmatprep.subr.mxu0 0.0
    %473 = vmatpush1.msra.mxu0 0.0
    %474 = vmatprep.subr.mxu0 0.0
    %475 = vmatpush1.msra.mxu0 0.0
    %476 = vmatprep.subr.mxu0 0.0
    %477 = vmatpush1.msra.mxu0 0.0
    %478 = vmatprep.subr.mxu0 0.0
    %479 = vmatpush1.msra.mxu0 0.0
    %480 = vmatprep.subr.mxu0 0.0
    %481 = vmatpush1.msra.mxu0 0.0
    %482 = vmatprep.subr.mxu0 0.0
    %483 = vmatpush1.msra.mxu0 0.0
    %484 = vmatprep.subr.mxu0 0.0
    %485 = vmatpush1.msra.mxu0 0.0
    %486 = vmatprep.subr.mxu0 0.0
    %487 = vmatpush1.msra.mxu0 0.0
    %488 = vmatprep.mubr.f32.mxu0 0.0
    %489 = vmatmul.mubr.f32.gmra.mrb[0].mxu0 %v394
    %v490 = vpop.f32.mrb[0].mxu0
    %v491 = vadd.f32 0.0, %v490
    %v492 = vpop.f32.mrb[0].mxu0
    %493 = vdwg.mxu0
    %494 = vmatprep.subr.mxu0 0.0
    %495 = vmatpush1.msra.mxu0 %v408
    %496 = vmatprep.subr.mxu0 0.0
    %497 = vmatpush1.msra.mxu0 %v409
    %498 = vmatprep.subr.mxu0 0.0
    %499 = vmatpush1.msra.mxu0 %v410
    %500 = vmatprep.subr.mxu0 0.0
    %501 = vmatpush1.msra.mxu0 %v411
    %502 = vmatprep.subr.mxu0 0.0
    %503 = vmatpush1.msra.mxu0 %v412
    %504 = vmatprep.subr.mxu0 0.0
    %505 = vmatpush1.msra.mxu0 %v413
    %506 = vmatprep.subr.mxu0 0.0
    %507 = vmatpush1.msra.mxu0 %v414
    %508 = vmatprep.subr.mxu0 0.0
    %509 = vmatpush1.msra.mxu0 %v415
    %510 = vmatprep.subr.mxu0 0.0
    %511 = vmatpush1.msra.mxu0 %v416
    %512 = vmatprep.subr.mxu0 0.0
    %513 = vmatpush1.msra.mxu0 %v417
    %514 = vmatprep.subr.mxu0 0.0
    %515 = vmatpush1.msra.mxu0 %v418
    %516 = vmatprep.subr.mxu0 0.0
    %517 = vmatpush1.msra.mxu0 %v419
    %518 = vmatprep.subr.mxu0 0.0
    %519 = vmatpush1.msra.mxu0 %v420
    %520 = vmatprep.subr.mxu0 0.0
    %521 = vmatpush1.msra.mxu0 %v421
    %522 = vmatprep.subr.mxu0 0.0
    %523 = vmatpush1.msra.mxu0 %v422
    %524 = vmatprep.subr.mxu0 0.0
    %525 = vmatpush1.msra.mxu0 %v423
    %526 = vmatprep.subr.mxu0 0.0
    %527 = vmatpush1.msra.mxu0 0.0
    %528 = vmatprep.subr.mxu0 0.0
    %529 = vmatpush1.msra.mxu0 0.0
    %530 = vmatprep.subr.mxu0 0.0
    %531 = vmatpush1.msra.mxu0 0.0
    %532 = vmatprep.subr.mxu0 0.0
    %533 = vmatpush1.msra.mxu0 0.0
    %534 = vmatprep.subr.mxu0 0.0
    %535 = vmatpush1.msra.mxu0 0.0
    %536 = vmatprep.subr.mxu0 0.0
    %537 = vmatpush1.msra.mxu0 0.0
    %538 = vmatprep.subr.mxu0 0.0
    %539 = vmatpush1.msra.mxu0 0.0
    %540 = vmatprep.subr.mxu0 0.0
    %541 = vmatpush1.msra.mxu0 0.0
    %542 = vmatprep.subr.mxu0 0.0
    %543 = vmatpush1.msra.mxu0 0.0
    %544 = vmatprep.subr.mxu0 0.0
    %545 = vmatpush1.msra.mxu0 0.0
    %546 = vmatprep.subr.mxu0 0.0
    %547 = vmatpush1.msra.mxu0 0.0
    %548 = vmatprep.subr.mxu0 0.0
    %549 = vmatpush1.msra.mxu0 0.0
    %550 = vmatprep.subr.mxu0 0.0
    %551 = vmatpush1.msra.mxu0 0.0
    %552 = vmatprep.subr.mxu0 0.0
    %553 = vmatpush1.msra.mxu0 0.0
    %554 = vmatprep.subr.mxu0 0.0
    %555 = vmatpush1.msra.mxu0 0.0
    %556 = vmatprep.subr.mxu0 0.0
    %557 = vmatpush1.msra.mxu0 0.0
    %558 = vmatprep.mubr.f32.mxu0 0.0
    %559 = vmatmul.mubr.f32.gmra.mrb[0].mxu0 %v407
    %v560 = vpop.f32.mrb[0].mxu0
    %v561 = vadd.f32 0.0, %v560
    %v562 = vpop.f32.mrb[0].mxu0
    %563 = vdwg.mxu0
    %v564 = vmul.f32 %v491, 0.001953125
    %v565 = vmul.f32 %v561, 0.001953125
    %v566 = vmul.f32 %v564, %v564
    %v567 = vsub.f32 %v565, %v566
    %v568 = vld [vmem:[%s3] sm:$0x1]
    %v569 = vadd.f32 %v567, 1e-05
    %v570 = vrsqrt.pop %v569
    %v571 = vmul.f32 %v568, %v570
    %v572 = vld [vmem:[%s4] sm:$0x1]
    %v573 = vmul.f32 %v564, %v571
    %v574 = vsub.f32 %v572, %v573
    %v576 = vlaneseq
    %v577 = vshrl.u32 %v576, 7
    %v578 = vsub.s32 0, %v577
    %v579 = vrot.slane %v571, %v578
    %v581 = vmul.f32 %v382, %v579
    %v582 = vmul.f32 %v383, %v579
    %v583 = vmul.f32 %v384, %v579
    %v584 = vmul.f32 %v385, %v579
    %v586 = vlaneseq
    %v587 = vshrl.u32 %v586, 7
    %v588 = vsub.s32 0, %v587
    %v589 = vrot.slane %v574, %v588
    %v591 = vadd.f32 %v581, %v589
    %v592 = vadd.f32 %v582, %v589
    %v593 = vadd.f32 %v583, %v589
    %v594 = vadd.f32 %v584, %v589
    %v595 = vmax.f32 %v591, 0.0
    %v596 = vmax.f32 %v592, 0.0
    %v597 = vmax.f32 %v593, 0.0
    %v598 = vmax.f32 %v594, 0.0
    %599 = vst [vmem:[#allocation7] sm:$0xff] %v595
    %600 = vst [vmem:[#allocation7 + $0x8] sm:$0xff] %v596
    %601 = vst [vmem:[#allocation7 + $0x10] sm:$0xff] %v597
    %602 = vst [vmem:[#allocation7 + $0x18] sm:$0xff] %v598
    // Predicated region
    $region30: #{tpu_custom_call.1} parent=1 // pred_check
      _
    $region31: #{tpu_custom_call.1} parent=1 // pred_check_branch
      %604 = sbr.rel (0) target = $region33
    $region32: #{tpu_custom_call.1} parent=1 // pred_region
      %s606 = ssub.s32 512, 512
      %607 = vsyncadd [#allocation4], %s606
      %s608 = sshll.u32 [#allocation7], 4
      %s609 = int_to_ptr.vmem [resolvable:$true] %s608
      %614 = dma.vmem_to_hbm [thread:$0]  %s609, 512, %s5, [#allocation4], 128, 128, 8
    $region33: #{tpu_custom_call.1} parent=1 // pred_fallthru
      _
    // Predicated region
    $region34: #{tpu_custom_call.1} parent=1 // pred_check
      _
    $region35: #{tpu_custom_call.1} parent=1 // pred_check_branch
      %616 = sbr.rel (0) target = $region37
    $region36: #{tpu_custom_call.1} parent=1 // pred_region
      %617 = dma.done [#allocation4], 512
    $region37: #{tpu_custom_call.1} parent=1 // pred_fallthru
      _
    %618 = vsyncpa [#allocation3], 1
    %619 = vsyncpa [#allocation6], 1
    %620 = vsyncpa [#allocation4], 1

</llo_original>
